<compile_context>
chip_gen: v7x
topology: tpu7x:2x2x1
jax: 0.10.0
libtpu: 0.0.40
codegen_flags: <defaults>
</compile_context>

<pallas_src>
import functools

import jax
import jax.numpy as jnp
import numpy as np
from jax.experimental import pallas as pl
from jax.experimental.pallas import tpu as pltpu

EPS = 1e-12  # F.normalize default eps (clamp on the norm)


def _round_up(n, m):
    return ((n + m - 1) // m) * m


def style_network_kernel(*refs, depth, has_text, neg_slope):
    """refs = (x_ref, [text_ref], w0x, [w0t], b0, w1, b1, ..., o_ref).

    Per layer: z = (h @ W_scaled) + b_scaled ; h = leaky_relu(z).
    Weights are pre-scaled by lr_mul and stored bf16 (in, out) layout; matmuls
    run on the MXU with fp32 accumulation; inter-layer activations are bf16.
    Layer 0's weight is split into x / text parts so no lane-axis concat is
    needed.
    """
    idx = 0
    x_ref = refs[idx]; idx += 1
    t_ref = None
    if has_text:
        t_ref = refs[idx]; idx += 1
    o_ref = refs[-1]
    w_refs = refs[idx:-1]

    # ---- F.normalize(x, dim=1): x * rsqrt(max(||x||^2, eps^2))  (EUP rsqrt)
    x = x_ref[...].astype(jnp.float32)
    sumsq = jnp.sum(x * x, axis=-1, keepdims=True)
    h = (x * jax.lax.rsqrt(jnp.maximum(sumsq, EPS * EPS))).astype(jnp.bfloat16)

    wi = 0
    for layer in range(depth):
        # matmul in bf16, accumulate fp32
        acc = jnp.dot(h, w_refs[wi][...], preferred_element_type=jnp.float32)
        wi += 1
        if layer == 0 and has_text:
            # split-weight accumulation replaces cat([x_norm, text_latent])
            acc = acc + jnp.dot(t_ref[...].astype(jnp.bfloat16), w_refs[wi][...],
                                preferred_element_type=jnp.float32)
            wi += 1
        z = acc + w_refs[wi][...]          # bias (lr_mul already folded in)
        wi += 1
        z = jnp.maximum(z, neg_slope * z)  # LeakyReLU(0.2): mul + max only
        if layer + 1 < depth:
            h = z.astype(jnp.bfloat16)     # bf16 inter-layer activation
        else:
            o_ref[...] = z.astype(o_ref.dtype)


def prepare_style_params(params, *, dim, lr_mul=0.1, has_text=False):
    """One-time (parameter-load-time) transform of torch-layout params.

    params: list of (weight, bias) per EqualLinear layer, weight (dim_out, dim_in),
    bias (dim_out,). Returns the flat list of kernel weight operands:
      layer 0: W_x (dim, dim) bf16, [W_text (d_text, dim) bf16], b (1, dim) f32
      layer i: W (dim, dim) bf16, b (1, dim) f32
    with lr_mul folded into both W and b.
    """
    arrays = []
    for li, (w, b) in enumerate(params):
        wt = jnp.transpose(w).astype(jnp.float32) * lr_mul   # (dim_in, dim_out)
        if li == 0 and has_text:
            arrays.append(wt[:dim].astype(jnp.bfloat16))      # x part
            arrays.append(wt[dim:].astype(jnp.bfloat16))      # text part
        else:
            arrays.append(wt.astype(jnp.bfloat16))
        arrays.append((b * lr_mul).reshape(1, -1).astype(jnp.float32))
    return arrays


def style_network(x, prepared_weights, *, depth, text_latent=None,
                  block_b=2048, neg_slope=0.2):
    """x: (B, dim) f32. text_latent: (B, dim_text_latent) f32 or None.

    prepared_weights: output of prepare_style_params() (already lr_mul-scaled,
    transposed, bf16 — no per-call weight preprocessing here).
    """
    B, dim = x.shape
    has_text = text_latent is not None
    d_text = text_latent.shape[-1] if has_text else 0

    # ---- batch tiling: big tiles (amortize per-step overhead), multiple of 8,
    # but keep >= 2 grid steps when B allows so v7x's second TensorCore works.
    tb = min(block_b, _round_up(B, 8))
    if B > 8:
        tb = max(8, min(tb, _round_up(-(-B // 2), 8)))
    nblk = pl.cdiv(B, tb)   # no input padding; partial last block is masked

    inputs = [x]
    in_specs = [pl.BlockSpec((tb, dim), lambda i: (i, 0))]
    if has_text:
        inputs.append(text_latent)
        in_specs.append(pl.BlockSpec((tb, d_text), lambda i: (i, 0)))

    def const_spec(arr):
        # constant index_map -> fetched once; single-buffer to halve weight VMEM
        return pl.BlockSpec(arr.shape, lambda i: (0, 0),
                            pipeline_mode=pl.Buffered(1))

    in_specs += [const_spec(a) for a in prepared_weights]
    inputs += list(prepared_weights)

    # ---- accurate VMEM budget: double-buffered x/text/out tiles, single-
    # buffered weights, plus fp32/bf16 live-intermediate headroom. Capped at
    # 40 MiB (leave headroom under v7x's 64 MiB physical VMEM).
    act_bytes = tb * dim * 4
    t_bytes = tb * d_text * 4 if has_text else 0
    w_bytes = int(sum(a.size * a.dtype.itemsize for a in prepared_weights))
    budget = 2 * act_bytes + 2 * t_bytes + 2 * act_bytes + w_bytes + 3 * act_bytes
    vmem_limit = int(min(max(int(1.5 * budget), 16 * 1024 * 1024),
                         40 * 1024 * 1024))

    kernel = functools.partial(style_network_kernel, depth=depth,
                               has_text=has_text, neg_slope=neg_slope)

    out = pl.pallas_call(
        kernel,
        out_shape=jax.ShapeDtypeStruct((B, dim), jnp.float32),
        grid=(nblk,),
        in_specs=in_specs,
        out_specs=pl.BlockSpec((tb, dim), lambda i: (i, 0)),
        compiler_params=pltpu.CompilerParams(
            dimension_semantics=("parallel",),
            vmem_limit_bytes=vmem_limit),
    )(*inputs)

    return out


def reference_style_network(x, params, *, lr_mul=0.1, text_latent=None,
                            neg_slope=0.2):
    """Pure-JAX fp32 reference mirroring the PyTorch StyleNetwork forward."""
    n = jnp.sqrt(jnp.sum(x * x, axis=1, keepdims=True))
    h = x / jnp.maximum(n, EPS)                      # F.normalize(x, dim=1)
    if text_latent is not None:
        h = jnp.concatenate([h, text_latent], axis=-1)
    for (w, b) in params:
        h = h @ (w * lr_mul).T + b * lr_mul          # EqualLinear
        h = jnp.where(h >= 0, h, neg_slope * h)      # LeakyReLU(0.2)
    return h


if __name__ == "__main__":
    # Small but lane-friendly configuration (dim multiple of 128 for dense stores).
    B, DIM, DIM_TEXT, DEPTH, LR_MUL = 2, 128, 64, 4, 0.1

    key = jax.random.PRNGKey(0)
    ks = jax.random.split(key, 2 * DEPTH + 2)
    f32 = jnp.float32

    params = []
    for i in range(DEPTH):
        dim_in = DIM + DIM_TEXT if i == 0 else DIM
        w = jax.random.normal(ks[2 * i], (DIM, dim_in), f32)       # torch: randn(dim_out, dim_in)
        b = 0.1 * jax.random.normal(ks[2 * i + 1], (DIM,), f32)    # torch zero-inits; perturbed to exercise the path
        params.append((w, b))

    x = jax.random.normal(ks[-2], (B, DIM), f32)
    text_latent = jax.random.normal(ks[-1], (B, DIM_TEXT), f32)

    # one-time weight preprocessing (hoisted out of the forward hot path)
    prepared = prepare_style_params(params, dim=DIM, lr_mul=LR_MUL, has_text=True)
    prepared = [jax.block_until_ready(a) for a in prepared]

    out = style_network(x, prepared, depth=DEPTH, text_latent=text_latent)
    out = jax.block_until_ready(out)

    ref = reference_style_network(x, params, lr_mul=LR_MUL, text_latent=text_latent)
    # kernel runs bf16 matmuls / bf16 inter-layer activations (fp32 accumulation);
    # reference is pure fp32, so tolerance is ~2e-2.
    np.testing.assert_allclose(np.asarray(out), np.asarray(ref), rtol=2e-2, atol=2e-2)

    print("KERNEL_OK")
</pallas_src>

<mosaic_0001>
module attributes {stable_mosaic.version = 11 : i64} {
  func.func @style_network_kernel(%arg0: i32, %arg1: memref<8x128xf32, #tpu.memory_space<vmem>>, %arg2: memref<8x64xf32, #tpu.memory_space<vmem>>, %arg3: memref<128x128xbf16, #tpu.memory_space<vmem>>, %arg4: memref<64x128xbf16, #tpu.memory_space<vmem>>, %arg5: memref<1x128xf32, #tpu.memory_space<vmem>>, %arg6: memref<128x128xbf16, #tpu.memory_space<vmem>>, %arg7: memref<1x128xf32, #tpu.memory_space<vmem>>, %arg8: memref<128x128xbf16, #tpu.memory_space<vmem>>, %arg9: memref<1x128xf32, #tpu.memory_space<vmem>>, %arg10: memref<128x128xbf16, #tpu.memory_space<vmem>>, %arg11: memref<1x128xf32, #tpu.memory_space<vmem>>, %arg12: memref<8x128xf32, #tpu.memory_space<vmem>>) attributes {dimension_semantics = [#tpu.dimension_semantics<parallel>], iteration_bounds = array<i64: 1>, scalar_prefetch = 0 : i64, scratch_operands = 0 : i64, tpu.core_type = #tpu.core_type<tc>, window_params = [{transform_indices = @transform_0, window_bounds = array<i64: 8, 128>}, {transform_indices = @transform_1, window_bounds = array<i64: 8, 64>}, {pipeline_mode = #tpu.pipeline_mode<synchronous>, transform_indices = @transform_2, window_bounds = array<i64: 128, 128>}, {pipeline_mode = #tpu.pipeline_mode<synchronous>, transform_indices = @transform_3, window_bounds = array<i64: 64, 128>}, {pipeline_mode = #tpu.pipeline_mode<synchronous>, transform_indices = @transform_4, window_bounds = array<i64: 1, 128>}, {pipeline_mode = #tpu.pipeline_mode<synchronous>, transform_indices = @transform_5, window_bounds = array<i64: 128, 128>}, {pipeline_mode = #tpu.pipeline_mode<synchronous>, transform_indices = @transform_6, window_bounds = array<i64: 1, 128>}, {pipeline_mode = #tpu.pipeline_mode<synchronous>, transform_indices = @transform_7, window_bounds = array<i64: 128, 128>}, {pipeline_mode = #tpu.pipeline_mode<synchronous>, transform_indices = @transform_8, window_bounds = array<i64: 1, 128>}, {pipeline_mode = #tpu.pipeline_mode<synchronous>, transform_indices = @transform_9, window_bounds = array<i64: 128, 128>}, {pipeline_mode = #tpu.pipeline_mode<synchronous>, transform_indices = @transform_10, window_bounds = array<i64: 1, 128>}, {transform_indices = @transform_11, window_bounds = array<i64: 8, 128>}]} {
    %c0 = arith.constant 0 : index
    %c0_0 = arith.constant 0 : index
    %0 = vector.load %arg1[%c0, %c0_0] : memref<8x128xf32, #tpu.memory_space<vmem>>, vector<8x128xf32>
    %1 = arith.mulf %0, %0 : vector<8x128xf32>
    %cst = arith.constant dense<0.000000e+00> : vector<8xf32>
    %2 = vector.multi_reduction <add>, %1, %cst [1] : vector<8x128xf32> to vector<8xf32>
    %3 = vector.shape_cast %2 : vector<8xf32> to vector<8x1xf32>
    %cst_1 = arith.constant 1.000000e-24 : f32
    %4 = vector.broadcast %cst_1 : f32 to vector<8x1xf32>
    %5 = arith.maximumf %3, %4 : vector<8x1xf32>
    %6 = math.rsqrt %5 : vector<8x1xf32>
    %7 = vector.broadcast %6 : vector<8x1xf32> to vector<8x128xf32>
    %8 = arith.mulf %0, %7 : vector<8x128xf32>
    %9 = arith.truncf %8 : vector<8x128xf32> to vector<8x128xbf16>
    %c0_2 = arith.constant 0 : index
    %c0_3 = arith.constant 0 : index
    %10 = vector.load %arg3[%c0_2, %c0_3] : memref<128x128xbf16, #tpu.memory_space<vmem>>, vector<128x128xbf16>
    %cst_4 = arith.constant dense<0.000000e+00> : vector<8x128xf32>
    %11 = tpu.matmul %9, %10, %cst_4 {dimension_numbers = #tpu.dot_dimension_numbers<[1], [0], [0], [1], [0, 0, 1, 1], [], []>} : vector<8x128xbf16>, vector<128x128xbf16>, vector<8x128xf32> -> vector<8x128xf32>
    %c0_5 = arith.constant 0 : index
    %c0_6 = arith.constant 0 : index
    %12 = vector.load %arg2[%c0_5, %c0_6] : memref<8x64xf32, #tpu.memory_space<vmem>>, vector<8x64xf32>
    %13 = arith.truncf %12 : vector<8x64xf32> to vector<8x64xbf16>
    %c0_7 = arith.constant 0 : index
    %c0_8 = arith.constant 0 : index
    %14 = vector.load %arg4[%c0_7, %c0_8] : memref<64x128xbf16, #tpu.memory_space<vmem>>, vector<64x128xbf16>
    %cst_9 = arith.constant dense<0.000000e+00> : vector<8x128xf32>
    %15 = tpu.matmul %13, %14, %cst_9 {dimension_numbers = #tpu.dot_dimension_numbers<[1], [0], [0], [1], [0, 0, 1, 1], [], []>} : vector<8x64xbf16>, vector<64x128xbf16>, vector<8x128xf32> -> vector<8x128xf32>
    %16 = arith.addf %11, %15 : vector<8x128xf32>
    %c0_10 = arith.constant 0 : index
    %c0_11 = arith.constant 0 : index
    %17 = vector.load %arg5[%c0_10, %c0_11] : memref<1x128xf32, #tpu.memory_space<vmem>>, vector<1x128xf32>
    %18 = vector.broadcast %17 : vector<1x128xf32> to vector<8x128xf32>
    %19 = arith.addf %16, %18 : vector<8x128xf32>
    %cst_12 = arith.constant 2.000000e-01 : f32
    %20 = vector.broadcast %cst_12 : f32 to vector<8x128xf32>
    %21 = arith.mulf %20, %19 : vector<8x128xf32>
    %22 = arith.maximumf %19, %21 : vector<8x128xf32>
    %23 = arith.truncf %22 : vector<8x128xf32> to vector<8x128xbf16>
    %c0_13 = arith.constant 0 : index
    %c0_14 = arith.constant 0 : index
    %24 = vector.load %arg6[%c0_13, %c0_14] : memref<128x128xbf16, #tpu.memory_space<vmem>>, vector<128x128xbf16>
    %cst_15 = arith.constant dense<0.000000e+00> : vector<8x128xf32>
    %25 = tpu.matmul %23, %24, %cst_15 {dimension_numbers = #tpu.dot_dimension_numbers<[1], [0], [0], [1], [0, 0, 1, 1], [], []>} : vector<8x128xbf16>, vector<128x128xbf16>, vector<8x128xf32> -> vector<8x128xf32>
    %c0_16 = arith.constant 0 : index
    %c0_17 = arith.constant 0 : index
    %26 = vector.load %arg7[%c0_16, %c0_17] : memref<1x128xf32, #tpu.memory_space<vmem>>, vector<1x128xf32>
    %27 = vector.broadcast %26 : vector<1x128xf32> to vector<8x128xf32>
    %28 = arith.addf %25, %27 : vector<8x128xf32>
    %cst_18 = arith.constant 2.000000e-01 : f32
    %29 = vector.broadcast %cst_18 : f32 to vector<8x128xf32>
    %30 = arith.mulf %29, %28 : vector<8x128xf32>
    %31 = arith.maximumf %28, %30 : vector<8x128xf32>
    %32 = arith.truncf %31 : vector<8x128xf32> to vector<8x128xbf16>
    %c0_19 = arith.constant 0 : index
    %c0_20 = arith.constant 0 : index
    %33 = vector.load %arg8[%c0_19, %c0_20] : memref<128x128xbf16, #tpu.memory_space<vmem>>, vector<128x128xbf16>
    %cst_21 = arith.constant dense<0.000000e+00> : vector<8x128xf32>
    %34 = tpu.matmul %32, %33, %cst_21 {dimension_numbers = #tpu.dot_dimension_numbers<[1], [0], [0], [1], [0, 0, 1, 1], [], []>} : vector<8x128xbf16>, vector<128x128xbf16>, vector<8x128xf32> -> vector<8x128xf32>
    %c0_22 = arith.constant 0 : index
    %c0_23 = arith.constant 0 : index
    %35 = vector.load %arg9[%c0_22, %c0_23] : memref<1x128xf32, #tpu.memory_space<vmem>>, vector<1x128xf32>
    %36 = vector.broadcast %35 : vector<1x128xf32> to vector<8x128xf32>
    %37 = arith.addf %34, %36 : vector<8x128xf32>
    %cst_24 = arith.constant 2.000000e-01 : f32
    %38 = vector.broadcast %cst_24 : f32 to vector<8x128xf32>
    %39 = arith.mulf %38, %37 : vector<8x128xf32>
    %40 = arith.maximumf %37, %39 : vector<8x128xf32>
    %41 = arith.truncf %40 : vector<8x128xf32> to vector<8x128xbf16>
    %c0_25 = arith.constant 0 : index
    %c0_26 = arith.constant 0 : index
    %42 = vector.load %arg10[%c0_25, %c0_26] : memref<128x128xbf16, #tpu.memory_space<vmem>>, vector<128x128xbf16>
    %cst_27 = arith.constant dense<0.000000e+00> : vector<8x128xf32>
    %43 = tpu.matmul %41, %42, %cst_27 {dimension_numbers = #tpu.dot_dimension_numbers<[1], [0], [0], [1], [0, 0, 1, 1], [], []>} : vector<8x128xbf16>, vector<128x128xbf16>, vector<8x128xf32> -> vector<8x128xf32>
    %c0_28 = arith.constant 0 : index
    %c0_29 = arith.constant 0 : index
    %44 = vector.load %arg11[%c0_28, %c0_29] : memref<1x128xf32, #tpu.memory_space<vmem>>, vector<1x128xf32>
    %45 = vector.broadcast %44 : vector<1x128xf32> to vector<8x128xf32>
    %46 = arith.addf %43, %45 : vector<8x128xf32>
    %cst_30 = arith.constant 2.000000e-01 : f32
    %47 = vector.broadcast %cst_30 : f32 to vector<8x128xf32>
    %48 = arith.mulf %47, %46 : vector<8x128xf32>
    %49 = arith.maximumf %46, %48 : vector<8x128xf32>
    %c0_31 = arith.constant 0 : index
    %c0_32 = arith.constant 0 : index
    %50 = vector.load %arg12[%c0_31, %c0_32] : memref<8x128xf32, #tpu.memory_space<vmem>>, vector<8x128xf32>
    tpu.vector_store %arg12[%c0_31, %c0_32], %49 {strides = array<i32>} : memref<8x128xf32, #tpu.memory_space<vmem>>, vector<8x128xf32>,
    return
  }
  func.func @transform_0(%arg0: i32) -> (i32, i32) {
    %c0_i32 = arith.constant 0 : i32
    %c0_i32_0 = arith.constant 0 : i32
    return %arg0, %c0_i32 : i32, i32
  }
  func.func @transform_1(%arg0: i32) -> (i32, i32) {
    %c0_i32 = arith.constant 0 : i32
    %c0_i32_0 = arith.constant 0 : i32
    return %arg0, %c0_i32 : i32, i32
  }
  func.func @transform_2(%arg0: i32) -> (i32, i32) {
    %c0_i32 = arith.constant 0 : i32
    %c0_i32_0 = arith.constant 0 : i32
    %c0_i32_1 = arith.constant 0 : i32
    return %c0_i32, %c0_i32_0 : i32, i32
  }
  func.func @transform_3(%arg0: i32) -> (i32, i32) {
    %c0_i32 = arith.constant 0 : i32
    %c0_i32_0 = arith.constant 0 : i32
    %c0_i32_1 = arith.constant 0 : i32
    return %c0_i32, %c0_i32_0 : i32, i32
  }
  func.func @transform_4(%arg0: i32) -> (i32, i32) {
    %c0_i32 = arith.constant 0 : i32
    %c0_i32_0 = arith.constant 0 : i32
    %c0_i32_1 = arith.constant 0 : i32
    return %c0_i32, %c0_i32_0 : i32, i32
  }
  func.func @transform_5(%arg0: i32) -> (i32, i32) {
    %c0_i32 = arith.constant 0 : i32
    %c0_i32_0 = arith.constant 0 : i32
    %c0_i32_1 = arith.constant 0 : i32
    return %c0_i32, %c0_i32_0 : i32, i32
  }
  func.func @transform_6(%arg0: i32) -> (i32, i32) {
    %c0_i32 = arith.constant 0 : i32
    %c0_i32_0 = arith.constant 0 : i32
    %c0_i32_1 = arith.constant 0 : i32
    return %c0_i32, %c0_i32_0 : i32, i32
  }
  func.func @transform_7(%arg0: i32) -> (i32, i32) {
    %c0_i32 = arith.constant 0 : i32
    %c0_i32_0 = arith.constant 0 : i32
    %c0_i32_1 = arith.constant 0 : i32
    return %c0_i32, %c0_i32_0 : i32, i32
  }
  func.func @transform_8(%arg0: i32) -> (i32, i32) {
    %c0_i32 = arith.constant 0 : i32
    %c0_i32_0 = arith.constant 0 : i32
    %c0_i32_1 = arith.constant 0 : i32
    return %c0_i32, %c0_i32_0 : i32, i32
  }
  func.func @transform_9(%arg0: i32) -> (i32, i32) {
    %c0_i32 = arith.constant 0 : i32
    %c0_i32_0 = arith.constant 0 : i32
    %c0_i32_1 = arith.constant 0 : i32
    return %c0_i32, %c0_i32_0 : i32, i32
  }
  func.func @transform_10(%arg0: i32) -> (i32, i32) {
    %c0_i32 = arith.constant 0 : i32
    %c0_i32_0 = arith.constant 0 : i32
    %c0_i32_1 = arith.constant 0 : i32
    return %c0_i32, %c0_i32_0 : i32, i32
  }
  func.func @transform_11(%arg0: i32) -> (i32, i32) {
    %c0_i32 = arith.constant 0 : i32
    %c0_i32_0 = arith.constant 0 : i32
    return %arg0, %c0_i32 : i32, i32
  }
}

</mosaic_0001>

<llo_original>
// kernel: tpu_custom_call.1
$region0: #{tpu_custom_call.1}
  #allocation0 [shape = 'u32[]', space=smem, size = 0x4, offset = 0x4, fixed_abs, tag = 'smem constant byte address 0x4 - core index']
  #allocation1 [shape = 'u32[144,128]{1,0:T(1,128)}', space=vmem, size = 0x12000, scoped, tag = 'internal scratch']
  %s0 = inlined_call_operand.hbm [shape: f32[2,128], index: 0, kind: input, shape index: {}]
  %s1 = inlined_call_operand.vmem [shape: f32[2,64], index: 1, kind: input, shape index: {}]
  %s2 = inlined_call_operand.hbm [shape: bf16[128,128], index: 2, kind: input, shape index: {}]
  %s3 = inlined_call_operand.hbm [shape: bf16[64,128], index: 3, kind: input, shape index: {}]
  %s4 = inlined_call_operand.vmem [shape: f32[1,128], index: 4, kind: input, shape index: {}]
  %s5 = inlined_call_operand.hbm [shape: bf16[128,128], index: 5, kind: input, shape index: {}]
  %s6 = inlined_call_operand.vmem [shape: f32[1,128], index: 6, kind: input, shape index: {}]
  %s7 = inlined_call_operand.hbm [shape: bf16[128,128], index: 7, kind: input, shape index: {}]
  %s8 = inlined_call_operand.vmem [shape: f32[1,128], index: 8, kind: input, shape index: {}]
  %s9 = inlined_call_operand.hbm [shape: bf16[128,128], index: 9, kind: input, shape index: {}]
  %s10 = inlined_call_operand.vmem [shape: f32[1,128], index: 10, kind: input, shape index: {}]
  %s11 = inlined_call_operand.hbm [shape: f32[2,128], index: 11, kind: output, shape index: {}]
  %s12 = sld [smem:[#allocation0]]
  $region78: #{tpu_custom_call.1} parent=0
    _
  %s14 = ssub.s32 1, %s12
  %s15 = scalar_select 0, %s14, %s12
  $region1: #{tpu_custom_call.1} parent=0
    #allocation2 [shape = 'u8[4096]{0}', space=vmem, size = 0x1000, scoped, tag = 'input window, operand 0, single buffered']
    #allocation3 [shape = 's32[1]{0}', space=sflag, size = 0x4, scoped, tag = 'scoped memory for tpu_custom_call.1']
    #allocation4 [shape = 's32[1]{0}', space=sflag, size = 0x4, scoped, tag = 'scoped memory for tpu_custom_call.1']
    #allocation5 [shape = 'u8[32768]{0}', space=vmem, size = 0x8000, scoped, tag = 'input window, operand 2, single buffered']
    #allocation6 [shape = 's32[1]{0}', space=sflag, size = 0x4, scoped, tag = 'scoped memory for tpu_custom_call.1']
    #allocation7 [shape = 'u8[16384]{0}', space=vmem, size = 0x4000, scoped, tag = 'input window, operand 3, single buffered']
    #allocation8 [shape = 'u8[32768]{0}', space=vmem, size = 0x8000, scoped, tag = 'input window, operand 5, single buffered']
    #allocation9 [shape = 's32[1]{0}', space=sflag, size = 0x4, scoped, tag = 'scoped memory for tpu_custom_call.1']
    #allocation10 [shape = 'u8[32768]{0}', space=vmem, size = 0x8000, scoped, tag = 'input window, operand 7, single buffered']
    #allocation11 [shape = 'u8[32768]{0}', space=vmem, size = 0x8000, scoped, tag = 'input window, operand 9, single buffered']
    #allocation12 [shape = 's32[1]{0}', space=sflag, size = 0x4, scoped, tag = 'scoped memory for tpu_custom_call.1']
    #allocation13 [shape = 'u8[4096]{0}', space=vmem, size = 0x1000, scoped, tag = 'output window, operand 0, single buffered']
    %16 = vsyncpa [#allocation3], 0
    %17 = vsyncpa [#allocation6], 0
    %18 = vsyncpa [#allocation9], 0
    %19 = vsyncpa [#allocation12], 0
    %20 = vsyncpa [#allocation4], 0
    // Predicated region
    $region2: #{tpu_custom_call.1} parent=1 // pred_check
      _
    $region3: #{tpu_custom_call.1} parent=1 // pred_check_branch
      %22 = sbr.rel (0) target = $region5
    $region4: #{tpu_custom_call.1} parent=1 // pred_region
      %s24 = ssub.s32 128, 32
      %25 = vsyncadd [#allocation3], %s24
      %s26 = sshll.u32 [#allocation2], 4
      %s27 = int_to_ptr.vmem [resolvable:$true] %s26
      %32 = dma.hbm_to_vmem [thread:$0]  %s0, 32, %s27, [#allocation3], 32, 32, 2
    $region5: #{tpu_custom_call.1} parent=1 // pred_fallthru
      _
    // Predicated region
    $region6: #{tpu_custom_call.1} parent=1 // pred_check
      _
    $region7: #{tpu_custom_call.1} parent=1 // pred_check_branch
      %34 = sbr.rel (0) target = $region9
    $region8: #{tpu_custom_call.1} parent=1 // pred_region
      _
    $region9: #{tpu_custom_call.1} parent=1 // pred_fallthru
      _
    // Predicated region
    $region10: #{tpu_custom_call.1} parent=1 // pred_check
      _
    $region11: #{tpu_custom_call.1} parent=1 // pred_check_branch
      %36 = sbr.rel (0) target = $region13
    $region12: #{tpu_custom_call.1} parent=1 // pred_region
      %s38 = ssub.s32 1024, 1024
      %39 = vsyncadd [#allocation6], %s38
      %s40 = sshll.u32 [#allocation5], 4
      %s41 = int_to_ptr.vmem [resolvable:$true] %s40
      %46 = dma.hbm_to_vmem [thread:$0]  %s2, 1024, %s41, [#allocation6], 64, 64, 4
    $region13: #{tpu_custom_call.1} parent=1 // pred_fallthru
      _
    // Predicated region
    $region14: #{tpu_custom_call.1} parent=1 // pred_check
      _
    $region15: #{tpu_custom_call.1} parent=1 // pred_check_branch
      %48 = sbr.rel (0) target = $region17
    $region16: #{tpu_custom_call.1} parent=1 // pred_region
      %s50 = ssub.s32 512, 512
      %51 = vsyncadd [#allocation6], %s50
      %s52 = sshll.u32 [#allocation7], 4
      %s53 = int_to_ptr.vmem [resolvable:$true] %s52
      %58 = dma.hbm_to_vmem [thread:$0]  %s3, 512, %s53, [#allocation6], 64, 64, 4
    $region17: #{tpu_custom_call.1} parent=1 // pred_fallthru
      _
    // Predicated region
    $region18: #{tpu_custom_call.1} parent=1 // pred_check
      _
    $region19: #{tpu_custom_call.1} parent=1 // pred_check_branch
      %60 = sbr.rel (0) target = $region21
    $region20: #{tpu_custom_call.1} parent=1 // pred_region
      _
    $region21: #{tpu_custom_call.1} parent=1 // pred_fallthru
      _
    // Predicated region
    $region22: #{tpu_custom_call.1} parent=1 // pred_check
      _
    $region23: #{tpu_custom_call.1} parent=1 // pred_check_branch
      %62 = sbr.rel (0) target = $region25
    $region24: #{tpu_custom_call.1} parent=1 // pred_region
      %s64 = ssub.s32 1024, 1024
      %65 = vsyncadd [#allocation9], %s64
      %s66 = sshll.u32 [#allocation8], 4
      %s67 = int_to_ptr.vmem [resolvable:$true] %s66
      %72 = dma.hbm_to_vmem [thread:$0]  %s5, 1024, %s67, [#allocation9], 64, 64, 4
    $region25: #{tpu_custom_call.1} parent=1 // pred_fallthru
      _
    // Predicated region
    $region26: #{tpu_custom_call.1} parent=1 // pred_check
      _
    $region27: #{tpu_custom_call.1} parent=1 // pred_check_branch
      %74 = sbr.rel (0) target = $region29
    $region28: #{tpu_custom_call.1} parent=1 // pred_region
      _
    $region29: #{tpu_custom_call.1} parent=1 // pred_fallthru
      _
    // Predicated region
    $region30: #{tpu_custom_call.1} parent=1 // pred_check
      _
    $region31: #{tpu_custom_call.1} parent=1 // pred_check_branch
      %76 = sbr.rel (0) target = $region33
    $region32: #{tpu_custom_call.1} parent=1 // pred_region
      %s78 = ssub.s32 1024, 1024
      %79 = vsyncadd [#allocation9], %s78
      %s80 = sshll.u32 [#allocation10], 4
      %s81 = int_to_ptr.vmem [resolvable:$true] %s80
      %86 = dma.hbm_to_vmem [thread:$0]  %s7, 1024, %s81, [#allocation9], 64, 64, 4
    $region33: #{tpu_custom_call.1} parent=1 // pred_fallthru
      _
    // Predicated region
    $region34: #{tpu_custom_call.1} parent=1 // pred_check
      _
    $region35: #{tpu_custom_call.1} parent=1 // pred_check_branch
      %88 = sbr.rel (0) target = $region37
    $region36: #{tpu_custom_call.1} parent=1 // pred_region
      _
    $region37: #{tpu_custom_call.1} parent=1 // pred_fallthru
      _
    // Predicated region
    $region38: #{tpu_custom_call.1} parent=1 // pred_check
      _
    $region39: #{tpu_custom_call.1} parent=1 // pred_check_branch
      %90 = sbr.rel (0) target = $region41
    $region40: #{tpu_custom_call.1} parent=1 // pred_region
      %s92 = ssub.s32 1024, 1024
      %93 = vsyncadd [#allocation12], %s92
      %s94 = sshll.u32 [#allocation11], 4
      %s95 = int_to_ptr.vmem [resolvable:$true] %s94
      %100 = dma.hbm_to_vmem [thread:$0]  %s9, 1024, %s95, [#allocation12], 64, 64, 4
    $region41: #{tpu_custom_call.1} parent=1 // pred_fallthru
      _
    // Predicated region
    $region42: #{tpu_custom_call.1} parent=1 // pred_check
      _
    $region43: #{tpu_custom_call.1} parent=1 // pred_check_branch
      %102 = sbr.rel (0) target = $region45
    $region44: #{tpu_custom_call.1} parent=1 // pred_region
      _
    $region45: #{tpu_custom_call.1} parent=1 // pred_fallthru
      _
    // Predicated region
    $region46: #{tpu_custom_call.1} parent=1 // pred_check
      _
    $region47: #{tpu_custom_call.1} parent=1 // pred_check_branch
      %104 = sbr.rel (0) target = $region49
    $region48: #{tpu_custom_call.1} parent=1 // pred_region
      %105 = dma.done [#allocation3], 128
    $region49: #{tpu_custom_call.1} parent=1 // pred_fallthru
      _
    // Predicated region
    $region50: #{tpu_custom_call.1} parent=1 // pred_check
      _
    $region51: #{tpu_custom_call.1} parent=1 // pred_check_branch
      %107 = sbr.rel (0) target = $region53
    $region52: #{tpu_custom_call.1} parent=1 // pred_region
      %108 = dma.done [#allocation6], 1024
    $region53: #{tpu_custom_call.1} parent=1 // pred_fallthru
      _
    // Predicated region
    $region54: #{tpu_custom_call.1} parent=1 // pred_check
      _
    $region55: #{tpu_custom_call.1} parent=1 // pred_check_branch
      %110 = sbr.rel (0) target = $region57
    $region56: #{tpu_custom_call.1} parent=1 // pred_region
      %111 = dma.done [#allocation6], 512
    $region57: #{tpu_custom_call.1} parent=1 // pred_fallthru
      _
    // Predicated region
    $region58: #{tpu_custom_call.1} parent=1 // pred_check
      _
    $region59: #{tpu_custom_call.1} parent=1 // pred_check_branch
      %113 = sbr.rel (0) target = $region61
    $region60: #{tpu_custom_call.1} parent=1 // pred_region
      %114 = dma.done [#allocation9], 1024
    $region61: #{tpu_custom_call.1} parent=1 // pred_fallthru
      _
    // Predicated region
    $region62: #{tpu_custom_call.1} parent=1 // pred_check
      _
    $region63: #{tpu_custom_call.1} parent=1 // pred_check_branch
      %116 = sbr.rel (0) target = $region65
    $region64: #{tpu_custom_call.1} parent=1 // pred_region
      %117 = dma.done [#allocation9], 1024
    $region65: #{tpu_custom_call.1} parent=1 // pred_fallthru
      _
    // Predicated region
    $region66: #{tpu_custom_call.1} parent=1 // pred_check
      _
    $region67: #{tpu_custom_call.1} parent=1 // pred_check_branch
      %119 = sbr.rel (0) target = $region69
    $region68: #{tpu_custom_call.1} parent=1 // pred_region
      %120 = dma.done [#allocation12], 1024
    $region69: #{tpu_custom_call.1} parent=1 // pred_fallthru
      _
    %v122 = vld [vmem:[#allocation2] sm:$0xff]
    %v123 = vmul.f32 %v122, %v122
    %124 = vadd.xlane.f32.xlu0 %v123
    %v125 = vpop.xlane.xlu0 %124
    %v126 = vmax.f32 %v125, 1e-24
    %v127 = vrsqrt.pop %v126
    %v128 = vmul.f32 %v122, %v127
    %v129 = vpack.c.bf16 %v128, %v128
    %v130 = vld [vmem:[#allocation5] sm:$0xf]
    %v131 = vld [vmem:[#allocation5 + $0x4] sm:$0xf]
    %v132 = vld [vmem:[#allocation5 + $0x8] sm:$0xf]
    %v133 = vld [vmem:[#allocation5 + $0xc] sm:$0xf]
    %v134 = vld [vmem:[#allocation5 + $0x10] sm:$0xf]
    %v135 = vld [vmem:[#allocation5 + $0x14] sm:$0xf]
    %v136 = vld [vmem:[#allocation5 + $0x18] sm:$0xf]
    %v137 = vld [vmem:[#allocation5 + $0x1c] sm:$0xf]
    %v138 = vld [vmem:[#allocation5 + $0x20] sm:$0xf]
    %v139 = vld [vmem:[#allocation5 + $0x24] sm:$0xf]
    %v140 = vld [vmem:[#allocation5 + $0x28] sm:$0xf]
    %v141 = vld [vmem:[#allocation5 + $0x2c] sm:$0xf]
    %v142 = vld [vmem:[#allocation5 + $0x30] sm:$0xf]
    %v143 = vld [vmem:[#allocation5 + $0x34] sm:$0xf]
    %v144 = vld [vmem:[#allocation5 + $0x38] sm:$0xf]
    %v145 = vld [vmem:[#allocation5 + $0x3c] sm:$0xf]
    %v146 = vld [vmem:[%s1] sm:$0xff]
    %v147 = vpack.c.bf16 %v146, %v146
    %v148 = vld [vmem:[#allocation7] sm:$0xf]
    %v149 = vld [vmem:[#allocation7 + $0x4] sm:$0xf]
    %v150 = vld [vmem:[#allocation7 + $0x8] sm:$0xf]
    %v151 = vld [vmem:[#allocation7 + $0xc] sm:$0xf]
    %v152 = vld [vmem:[#allocation7 + $0x10] sm:$0xf]
    %v153 = vld [vmem:[#allocation7 + $0x14] sm:$0xf]
    %v154 = vld [vmem:[#allocation7 + $0x18] sm:$0xf]
    %v155 = vld [vmem:[#allocation7 + $0x1c] sm:$0xf]
    %v164 = vunpack.c.l.b16 %v148
    %v165 = vunpack.c.l.b16 %v149
    %v166 = vunpack.c.l.b16 %v150
    %v167 = vunpack.c.l.b16 %v151
    %v168 = vunpack.c.l.b16 %v152
    %v169 = vunpack.c.l.b16 %v153
    %v170 = vunpack.c.l.b16 %v154
    %v171 = vunpack.c.l.b16 %v155
    %v172 = vpack.c.b16 %v165, %v164
    %v173 = vpack.c.b16 %v167, %v166
    %v174 = vpack.c.b16 %v169, %v168
    %v175 = vpack.c.b16 %v171, %v170
    %vm180 = vcmask 523264
    %v182 = vsel %vm180, %v147, 0
    %184 = vmatprep.subr.bf16.mxu0 0
    %185 = vmatpush1.bf16.msra.mxu0 %v172
    %186 = vmatprep.subr.bf16.mxu0 0
    %187 = vmatpush1.bf16.msra.mxu0 %v173
    %188 = vmatprep.subr.bf16.mxu0 0
    %189 = vmatpush1.bf16.msra.mxu0 %v174
    %190 = vmatprep.subr.bf16.mxu0 0
    %191 = vmatpush1.bf16.msra.mxu0 %v175
    %192 = vmatprep.subr.bf16.mxu0 0
    %193 = vmatpush1.bf16.msra.mxu0 0
    %194 = vmatprep.subr.bf16.mxu0 0
    %195 = vmatpush1.bf16.msra.mxu0 0
    %196 = vmatprep.subr.bf16.mxu0 0
    %197 = vmatpush1.bf16.msra.mxu0 0
    %198 = vmatprep.subr.bf16.mxu0 0
    %199 = vmatpush1.bf16.msra.mxu0 0
    %200 = vmatprep.subr.bf16.mxu0 0
    %201 = vmatpush1.bf16.msra.mxu0 0
    %202 = vmatprep.subr.bf16.mxu0 0
    %203 = vmatpush1.bf16.msra.mxu0 0
    %204 = vmatprep.subr.bf16.mxu0 0
    %205 = vmatpush1.bf16.msra.mxu0 0
    %206 = vmatprep.subr.bf16.mxu0 0
    %207 = vmatpush1.bf16.msra.mxu0 0
    %208 = vmatprep.subr.bf16.mxu0 0
    %209 = vmatpush1.bf16.msra.mxu0 0
    %210 = vmatprep.subr.bf16.mxu0 0
    %211 = vmatpush1.bf16.msra.mxu0 0
    %212 = vmatprep.subr.bf16.mxu0 0
    %213 = vmatpush1.bf16.msra.mxu0 0
    %214 = vmatprep.subr.bf16.mxu0 0
    %215 = vmatpush1.bf16.msra.mxu0 0
    %216 = vmatprep.mubr.bf16.mxu0 0
    %217 = vmatmul.mubr.bf16.gmra.mrb[0].mxu0 %v182
    %v218 = vpop.f32.mrb[0].mxu0
    %v219 = vadd.f32 0.0, %v218
    %v220 = vpop.f32.mrb[0].mxu0
    %v221 = vpop.f32.mrb[0].mxu0
    %v222 = vpop.f32.mrb[0].mxu0
    %223 = vdwg.mxu0
    %v240 = vunpack.c.l.b16 %v130
    %v241 = vunpack.c.l.b16 %v131
    %v242 = vunpack.c.l.b16 %v132
    %v243 = vunpack.c.l.b16 %v133
    %v244 = vunpack.c.l.b16 %v134
    %v245 = vunpack.c.l.b16 %v135
    %v246 = vunpack.c.l.b16 %v136
    %v247 = vunpack.c.l.b16 %v137
    %v248 = vunpack.c.l.b16 %v138
    %v249 = vunpack.c.l.b16 %v139
    %v250 = vunpack.c.l.b16 %v140
    %v251 = vunpack.c.l.b16 %v141
    %v252 = vunpack.c.l.b16 %v142
    %v253 = vunpack.c.l.b16 %v143
    %v254 = vunpack.c.l.b16 %v144
    %v255 = vunpack.c.l.b16 %v145
    %v256 = vpack.c.b16 %v241, %v240
    %v257 = vpack.c.b16 %v243, %v242
    %v258 = vpack.c.b16 %v245, %v244
    %v259 = vpack.c.b16 %v247, %v246
    %v260 = vpack.c.b16 %v249, %v248
    %v261 = vpack.c.b16 %v251, %v250
    %v262 = vpack.c.b16 %v253, %v252
    %v263 = vpack.c.b16 %v255, %v254
    %272 = vmatprep.subr.bf16.mxu0 0
    %273 = vmatpush1.bf16.msra.mxu0 %v256
    %274 = vmatprep.subr.bf16.mxu0 0
    %275 = vmatpush1.bf16.msra.mxu0 %v257
    %276 = vmatprep.subr.bf16.mxu0 0
    %277 = vmatpush1.bf16.msra.mxu0 %v258
    %278 = vmatprep.subr.bf16.mxu0 0
    %279 = vmatpush1.bf16.msra.mxu0 %v259
    %280 = vmatprep.subr.bf16.mxu0 0
    %281 = vmatpush1.bf16.msra.mxu0 %v260
    %282 = vmatprep.subr.bf16.mxu0 0
    %283 = vmatpush1.bf16.msra.mxu0 %v261
    %284 = vmatprep.subr.bf16.mxu0 0
    %285 = vmatpush1.bf16.msra.mxu0 %v262
    %286 = vmatprep.subr.bf16.mxu0 0
    %287 = vmatpush1.bf16.msra.mxu0 %v263
    %288 = vmatprep.subr.bf16.mxu0 0
    %289 = vmatpush1.bf16.msra.mxu0 0
    %290 = vmatprep.subr.bf16.mxu0 0
    %291 = vmatpush1.bf16.msra.mxu0 0
    %292 = vmatprep.subr.bf16.mxu0 0
    %293 = vmatpush1.bf16.msra.mxu0 0
    %294 = vmatprep.subr.bf16.mxu0 0
    %295 = vmatpush1.bf16.msra.mxu0 0
    %296 = vmatprep.subr.bf16.mxu0 0
    %297 = vmatpush1.bf16.msra.mxu0 0
    %298 = vmatprep.subr.bf16.mxu0 0
    %299 = vmatpush1.bf16.msra.mxu0 0
    %300 = vmatprep.subr.bf16.mxu0 0
    %301 = vmatpush1.bf16.msra.mxu0 0
    %302 = vmatprep.subr.bf16.mxu0 0
    %303 = vmatpush1.bf16.msra.mxu0 0
    %304 = vmatprep.mubr.bf16.mxu0 0
    %305 = vmatmul.mubr.bf16.gmra.mrb[0].mxu0 %v129
    %v306 = vpop.f32.mrb[0].mxu0
    %v307 = vadd.f32 %v219, %v306
    %v308 = vpop.f32.mrb[0].mxu0
    %v309 = vpop.f32.mrb[0].mxu0
    %v310 = vpop.f32.mrb[0].mxu0
    %311 = vdwg.mxu0
    %v312 = vld [vmem:[%s4] sm:$0x1]
    %v314 = vlaneseq
    %v315 = vshrl.u32 %v314, 7
    %v316 = vsub.s32 0, %v315
    %v317 = vrot.slane %v312, %v316
    %v319 = vadd.f32 %v307, %v317
    %v320 = vmul.f32 %v319, 0.2
    %v321 = vmax.f32 %v319, %v320
    %v322 = vpack.c.bf16 %v321, %v321
    %v323 = vld [vmem:[#allocation8] sm:$0xf]
    %v324 = vld [vmem:[#allocation8 + $0x4] sm:$0xf]
    %v325 = vld [vmem:[#allocation8 + $0x8] sm:$0xf]
    %v326 = vld [vmem:[#allocation8 + $0xc] sm:$0xf]
    %v327 = vld [vmem:[#allocation8 + $0x10] sm:$0xf]
    %v328 = vld [vmem:[#allocation8 + $0x14] sm:$0xf]
    %v329 = vld [vmem:[#allocation8 + $0x18] sm:$0xf]
    %v330 = vld [vmem:[#allocation8 + $0x1c] sm:$0xf]
    %v331 = vld [vmem:[#allocation8 + $0x20] sm:$0xf]
    %v332 = vld [vmem:[#allocation8 + $0x24] sm:$0xf]
    %v333 = vld [vmem:[#allocation8 + $0x28] sm:$0xf]
    %v334 = vld [vmem:[#allocation8 + $0x2c] sm:$0xf]
    %v335 = vld [vmem:[#allocation8 + $0x30] sm:$0xf]
    %v336 = vld [vmem:[#allocation8 + $0x34] sm:$0xf]
    %v337 = vld [vmem:[#allocation8 + $0x38] sm:$0xf]
    %v338 = vld [vmem:[#allocation8 + $0x3c] sm:$0xf]
    %v339 = vld [vmem:[%s6] sm:$0x1]
    %v341 = vlaneseq
    %v342 = vshrl.u32 %v341, 7
    %v343 = vsub.s32 0, %v342
    %v344 = vrot.slane %v339, %v343
    %v362 = vunpack.c.l.b16 %v323
    %v363 = vunpack.c.l.b16 %v324
    %v364 = vunpack.c.l.b16 %v325
    %v365 = vunpack.c.l.b16 %v326
    %v366 = vunpack.c.l.b16 %v327
    %v367 = vunpack.c.l.b16 %v328
    %v368 = vunpack.c.l.b16 %v329
    %v369 = vunpack.c.l.b16 %v330
    %v370 = vunpack.c.l.b16 %v331
    %v371 = vunpack.c.l.b16 %v332
    %v372 = vunpack.c.l.b16 %v333
    %v373 = vunpack.c.l.b16 %v334
    %v374 = vunpack.c.l.b16 %v335
    %v375 = vunpack.c.l.b16 %v336
    %v376 = vunpack.c.l.b16 %v337
    %v377 = vunpack.c.l.b16 %v338
    %v378 = vpack.c.b16 %v363, %v362
    %v379 = vpack.c.b16 %v365, %v364
    %v380 = vpack.c.b16 %v367, %v366
    %v381 = vpack.c.b16 %v369, %v368
    %v382 = vpack.c.b16 %v371, %v370
    %v383 = vpack.c.b16 %v373, %v372
    %v384 = vpack.c.b16 %v375, %v374
    %v385 = vpack.c.b16 %v377, %v376
    %394 = vmatprep.subr.bf16.mxu0 0
    %395 = vmatpush1.bf16.msra.mxu0 %v378
    %396 = vmatprep.subr.bf16.mxu0 0
    %397 = vmatpush1.bf16.msra.mxu0 %v379
    %398 = vmatprep.subr.bf16.mxu0 0
    %399 = vmatpush1.bf16.msra.mxu0 %v380
    %400 = vmatprep.subr.bf16.mxu0 0
    %401 = vmatpush1.bf16.msra.mxu0 %v381
    %402 = vmatprep.subr.bf16.mxu0 0
    %403 = vmatpush1.bf16.msra.mxu0 %v382
    %404 = vmatprep.subr.bf16.mxu0 0
    %405 = vmatpush1.bf16.msra.mxu0 %v383
    %406 = vmatprep.subr.bf16.mxu0 0
    %407 = vmatpush1.bf16.msra.mxu0 %v384
    %408 = vmatprep.subr.bf16.mxu0 0
    %409 = vmatpush1.bf16.msra.mxu0 %v385
    %410 = vmatprep.subr.bf16.mxu0 0
    %411 = vmatpush1.bf16.msra.mxu0 0
    %412 = vmatprep.subr.bf16.mxu0 0
    %413 = vmatpush1.bf16.msra.mxu0 0
    %414 = vmatprep.subr.bf16.mxu0 0
    %415 = vmatpush1.bf16.msra.mxu0 0
    %416 = vmatprep.subr.bf16.mxu0 0
    %417 = vmatpush1.bf16.msra.mxu0 0
    %418 = vmatprep.subr.bf16.mxu0 0
    %419 = vmatpush1.bf16.msra.mxu0 0
    %420 = vmatprep.subr.bf16.mxu0 0
    %421 = vmatpush1.bf16.msra.mxu0 0
    %422 = vmatprep.subr.bf16.mxu0 0
    %423 = vmatpush1.bf16.msra.mxu0 0
    %424 = vmatprep.subr.bf16.mxu0 0
    %425 = vmatpush1.bf16.msra.mxu0 0
    %426 = vmatprep.mubr.bf16.mxu0 0
    %427 = vmatmul.mubr.bf16.gmra.mrb[0].mxu0 %v322
    %v428 = vpop.f32.mrb[0].mxu0
    %v429 = vadd.f32 %v344, %v428
    %v430 = vpop.f32.mrb[0].mxu0
    %v431 = vpop.f32.mrb[0].mxu0
    %v432 = vpop.f32.mrb[0].mxu0
    %433 = vdwg.mxu0
    %v434 = vmul.f32 %v429, 0.2
    %v435 = vmax.f32 %v429, %v434
    %v436 = vpack.c.bf16 %v435, %v435
    %v437 = vld [vmem:[#allocation10] sm:$0xf]
    %v438 = vld [vmem:[#allocation10 + $0x4] sm:$0xf]
    %v439 = vld [vmem:[#allocation10 + $0x8] sm:$0xf]
    %v440 = vld [vmem:[#allocation10 + $0xc] sm:$0xf]
    %v441 = vld [vmem:[#allocation10 + $0x10] sm:$0xf]
    %v442 = vld [vmem:[#allocation10 + $0x14] sm:$0xf]
    %v443 = vld [vmem:[#allocation10 + $0x18] sm:$0xf]
    %v444 = vld [vmem:[#allocation10 + $0x1c] sm:$0xf]
    %v445 = vld [vmem:[#allocation10 + $0x20] sm:$0xf]
    %v446 = vld [vmem:[#allocation10 + $0x24] sm:$0xf]
    %v447 = vld [vmem:[#allocation10 + $0x28] sm:$0xf]
    %v448 = vld [vmem:[#allocation10 + $0x2c] sm:$0xf]
    %v449 = vld [vmem:[#allocation10 + $0x30] sm:$0xf]
    %v450 = vld [vmem:[#allocation10 + $0x34] sm:$0xf]
    %v451 = vld [vmem:[#allocation10 + $0x38] sm:$0xf]
    %v452 = vld [vmem:[#allocation10 + $0x3c] sm:$0xf]
    %v453 = vld [vmem:[%s8] sm:$0x1]
    %v455 = vlaneseq
    %v456 = vshrl.u32 %v455, 7
    %v457 = vsub.s32 0, %v456
    %v458 = vrot.slane %v453, %v457
    %v476 = vunpack.c.l.b16 %v437
    %v477 = vunpack.c.l.b16 %v438
    %v478 = vunpack.c.l.b16 %v439
    %v479 = vunpack.c.l.b16 %v440
    %v480 = vunpack.c.l.b16 %v441
    %v481 = vunpack.c.l.b16 %v442
    %v482 = vunpack.c.l.b16 %v443
    %v483 = vunpack.c.l.b16 %v444
    %v484 = vunpack.c.l.b16 %v445
    %v485 = vunpack.c.l.b16 %v446
    %v486 = vunpack.c.l.b16 %v447
    %v487 = vunpack.c.l.b16 %v448
    %v488 = vunpack.c.l.b16 %v449
    %v489 = vunpack.c.l.b16 %v450
    %v490 = vunpack.c.l.b16 %v451
    %v491 = vunpack.c.l.b16 %v452
    %v492 = vpack.c.b16 %v477, %v476
    %v493 = vpack.c.b16 %v479, %v478
    %v494 = vpack.c.b16 %v481, %v480
    %v495 = vpack.c.b16 %v483, %v482
    %v496 = vpack.c.b16 %v485, %v484
    %v497 = vpack.c.b16 %v487, %v486
    %v498 = vpack.c.b16 %v489, %v488
    %v499 = vpack.c.b16 %v491, %v490
    %508 = vmatprep.subr.bf16.mxu0 0
    %509 = vmatpush1.bf16.msra.mxu0 %v492
    %510 = vmatprep.subr.bf16.mxu0 0
    %511 = vmatpush1.bf16.msra.mxu0 %v493
    %512 = vmatprep.subr.bf16.mxu0 0
    %513 = vmatpush1.bf16.msra.mxu0 %v494
    %514 = vmatprep.subr.bf16.mxu0 0
    %515 = vmatpush1.bf16.msra.mxu0 %v495
    %516 = vmatprep.subr.bf16.mxu0 0
    %517 = vmatpush1.bf16.msra.mxu0 %v496
    %518 = vmatprep.subr.bf16.mxu0 0
    %519 = vmatpush1.bf16.msra.mxu0 %v497
    %520 = vmatprep.subr.bf16.mxu0 0
    %521 = vmatpush1.bf16.msra.mxu0 %v498
    %522 = vmatprep.subr.bf16.mxu0 0
    %523 = vmatpush1.bf16.msra.mxu0 %v499
    %524 = vmatprep.subr.bf16.mxu0 0
    %525 = vmatpush1.bf16.msra.mxu0 0
    %526 = vmatprep.subr.bf16.mxu0 0
    %527 = vmatpush1.bf16.msra.mxu0 0
    %528 = vmatprep.subr.bf16.mxu0 0
    %529 = vmatpush1.bf16.msra.mxu0 0
    %530 = vmatprep.subr.bf16.mxu0 0
    %531 = vmatpush1.bf16.msra.mxu0 0
    %532 = vmatprep.subr.bf16.mxu0 0
    %533 = vmatpush1.bf16.msra.mxu0 0
    %534 = vmatprep.subr.bf16.mxu0 0
    %535 = vmatpush1.bf16.msra.mxu0 0
    %536 = vmatprep.subr.bf16.mxu0 0
    %537 = vmatpush1.bf16.msra.mxu0 0
    %538 = vmatprep.subr.bf16.mxu0 0
    %539 = vmatpush1.bf16.msra.mxu0 0
    %540 = vmatprep.mubr.bf16.mxu0 0
    %541 = vmatmul.mubr.bf16.gmra.mrb[0].mxu0 %v436
    %v542 = vpop.f32.mrb[0].mxu0
    %v543 = vadd.f32 %v458, %v542
    %v544 = vpop.f32.mrb[0].mxu0
    %v545 = vpop.f32.mrb[0].mxu0
    %v546 = vpop.f32.mrb[0].mxu0
    %547 = vdwg.mxu0
    %v548 = vmul.f32 %v543, 0.2
    %v549 = vmax.f32 %v543, %v548
    %v550 = vpack.c.bf16 %v549, %v549
    %v551 = vld [vmem:[#allocation11] sm:$0xf]
    %v552 = vld [vmem:[#allocation11 + $0x4] sm:$0xf]
    %v553 = vld [vmem:[#allocation11 + $0x8] sm:$0xf]
    %v554 = vld [vmem:[#allocation11 + $0xc] sm:$0xf]
    %v555 = vld [vmem:[#allocation11 + $0x10] sm:$0xf]
    %v556 = vld [vmem:[#allocation11 + $0x14] sm:$0xf]
    %v557 = vld [vmem:[#allocation11 + $0x18] sm:$0xf]
    %v558 = vld [vmem:[#allocation11 + $0x1c] sm:$0xf]
    %v559 = vld [vmem:[#allocation11 + $0x20] sm:$0xf]
    %v560 = vld [vmem:[#allocation11 + $0x24] sm:$0xf]
    %v561 = vld [vmem:[#allocation11 + $0x28] sm:$0xf]
    %v562 = vld [vmem:[#allocation11 + $0x2c] sm:$0xf]
    %v563 = vld [vmem:[#allocation11 + $0x30] sm:$0xf]
    %v564 = vld [vmem:[#allocation11 + $0x34] sm:$0xf]
    %v565 = vld [vmem:[#allocation11 + $0x38] sm:$0xf]
    %v566 = vld [vmem:[#allocation11 + $0x3c] sm:$0xf]
    %v567 = vld [vmem:[%s10] sm:$0x1]
    %v569 = vlaneseq
    %v570 = vshrl.u32 %v569, 7
    %v571 = vsub.s32 0, %v570
    %v572 = vrot.slane %v567, %v571
    %v590 = vunpack.c.l.b16 %v551
    %v591 = vunpack.c.l.b16 %v552
    %v592 = vunpack.c.l.b16 %v553
    %v593 = vunpack.c.l.b16 %v554
    %v594 = vunpack.c.l.b16 %v555
    %v595 = vunpack.c.l.b16 %v556
    %v596 = vunpack.c.l.b16 %v557
    %v597 = vunpack.c.l.b16 %v558
    %v598 = vunpack.c.l.b16 %v559
    %v599 = vunpack.c.l.b16 %v560
    %v600 = vunpack.c.l.b16 %v561
    %v601 = vunpack.c.l.b16 %v562
    %v602 = vunpack.c.l.b16 %v563
    %v603 = vunpack.c.l.b16 %v564
    %v604 = vunpack.c.l.b16 %v565
    %v605 = vunpack.c.l.b16 %v566
    %v606 = vpack.c.b16 %v591, %v590
    %v607 = vpack.c.b16 %v593, %v592
    %v608 = vpack.c.b16 %v595, %v594
    %v609 = vpack.c.b16 %v597, %v596
    %v610 = vpack.c.b16 %v599, %v598
    %v611 = vpack.c.b16 %v601, %v600
    %v612 = vpack.c.b16 %v603, %v602
    %v613 = vpack.c.b16 %v605, %v604
    %622 = vmatprep.subr.bf16.mxu0 0
    %623 = vmatpush1.bf16.msra.mxu0 %v606
    %624 = vmatprep.subr.bf16.mxu0 0
    %625 = vmatpush1.bf16.msra.mxu0 %v607
    %626 = vmatprep.subr.bf16.mxu0 0
    %627 = vmatpush1.bf16.msra.mxu0 %v608
    %628 = vmatprep.subr.bf16.mxu0 0
    %629 = vmatpush1.bf16.msra.mxu0 %v609
    %630 = vmatprep.subr.bf16.mxu0 0
    %631 = vmatpush1.bf16.msra.mxu0 %v610
    %632 = vmatprep.subr.bf16.mxu0 0
    %633 = vmatpush1.bf16.msra.mxu0 %v611
    %634 = vmatprep.subr.bf16.mxu0 0
    %635 = vmatpush1.bf16.msra.mxu0 %v612
    %636 = vmatprep.subr.bf16.mxu0 0
    %637 = vmatpush1.bf16.msra.mxu0 %v613
    %638 = vmatprep.subr.bf16.mxu0 0
    %639 = vmatpush1.bf16.msra.mxu0 0
    %640 = vmatprep.subr.bf16.mxu0 0
    %641 = vmatpush1.bf16.msra.mxu0 0
    %642 = vmatprep.subr.bf16.mxu0 0
    %643 = vmatpush1.bf16.msra.mxu0 0
    %644 = vmatprep.subr.bf16.mxu0 0
    %645 = vmatpush1.bf16.msra.mxu0 0
    %646 = vmatprep.subr.bf16.mxu0 0
    %647 = vmatpush1.bf16.msra.mxu0 0
    %648 = vmatprep.subr.bf16.mxu0 0
    %649 = vmatpush1.bf16.msra.mxu0 0
    %650 = vmatprep.subr.bf16.mxu0 0
    %651 = vmatpush1.bf16.msra.mxu0 0
    %652 = vmatprep.subr.bf16.mxu0 0
    %653 = vmatpush1.bf16.msra.mxu0 0
    %654 = vmatprep.mubr.bf16.mxu0 0
    %655 = vmatmul.mubr.bf16.gmra.mrb[0].mxu0 %v550
    %v656 = vpop.f32.mrb[0].mxu0
    %v657 = vadd.f32 %v572, %v656
    %v658 = vpop.f32.mrb[0].mxu0
    %v659 = vpop.f32.mrb[0].mxu0
    %v660 = vpop.f32.mrb[0].mxu0
    %661 = vdwg.mxu0
    %v662 = vmul.f32 %v657, 0.2
    %v663 = vmax.f32 %v657, %v662
    %664 = vst [vmem:[#allocation13] sm:$0xff] %v663
    // Predicated region
    $region70: #{tpu_custom_call.1} parent=1 // pred_check
      _
    $region71: #{tpu_custom_call.1} parent=1 // pred_check_branch
      %666 = sbr.rel (0) target = $region73
    $region72: #{tpu_custom_call.1} parent=1 // pred_region
      %s668 = ssub.s32 128, 32
      %669 = vsyncadd [#allocation4], %s668
      %s670 = sshll.u32 [#allocation13], 4
      %s671 = int_to_ptr.vmem [resolvable:$true] %s670
      %676 = dma.vmem_to_hbm [thread:$0]  %s671, 32, %s11, [#allocation4], 32, 32, 2
    $region73: #{tpu_custom_call.1} parent=1 // pred_fallthru
      _
    // Predicated region
    $region74: #{tpu_custom_call.1} parent=1 // pred_check
      _
    $region75: #{tpu_custom_call.1} parent=1 // pred_check_branch
      %678 = sbr.rel (0) target = $region77
    $region76: #{tpu_custom_call.1} parent=1 // pred_region
      %679 = dma.done [#allocation4], 128
    $region77: #{tpu_custom_call.1} parent=1 // pred_fallthru
      _
    %680 = vsyncpa [#allocation3], 1
    %681 = vsyncpa [#allocation6], 1
    %682 = vsyncpa [#allocation9], 1
    %683 = vsyncpa [#allocation12], 1
    %684 = vsyncpa [#allocation4], 1

</llo_original>
